<compile_context>
chip_gen: v6e
topology: v6e:2x2x1
jax: 0.10.0
libtpu: 0.0.40
codegen_flags: <defaults>
</compile_context>

<pallas_src>
import functools

import jax
import jax.numpy as jnp
from jax.experimental import pallas as pl
from jax.experimental.pallas import tpu as pltpu

# Module constants (from the reference script).
EPS = 0.75
DELTA = 0.035
GAMMA = 7.0


def _tight_sigmoid_kernel(m_ref, b_ref, obj_ref, *, eps, delta, gamma):
    """m_ref, b_ref: (1,) f32 in SMEM; obj_ref: (1,1) f32 in VMEM."""
    # Trace-time constant folding (Python floats, no in-kernel work).
    scale = 1.0 + gamma * delta
    one_plus_delta = 1.0 + delta

    # Scalar loads from SMEM, splatted to (1,1) so all arithmetic and both
    # transcendentals stay on the well-supported vector/EUP path.
    m = jnp.full((1, 1), m_ref[0], dtype=jnp.float32)
    b = jnp.full((1, 1), b_ref[0], dtype=jnp.float32)

    # u(-eps) and u(0);  u(0) depends only on b.
    u_neg_eps = scale * jax.nn.sigmoid(b - m * eps)
    u_zero = scale * jax.nn.sigmoid(b)

    # Single-element objective: no reduction needed.
    obj_ref[...] = jnp.square(delta - u_neg_eps) + jnp.square(
        one_plus_delta - u_zero
    )


def tight_sigmoid_forward(m, b, *, eps=EPS, delta=DELTA, gamma=GAMMA):
    """Pallas wrapper.

    m, b: shape (1,) float32 parameter arrays (as in the PyTorch module).
    Returns a (1, 1) float32 array holding the scalar objective (no extra
    post-kernel slice/reshape HLOs are emitted; reshape at the call site if a
    0-d value is required).
    """
    kernel = functools.partial(
        _tight_sigmoid_kernel, eps=float(eps), delta=float(delta), gamma=float(gamma)
    )

    return pl.pallas_call(
        kernel,
        out_shape=jax.ShapeDtypeStruct((1, 1), jnp.float32),
        in_specs=[
            pl.BlockSpec(memory_space=pltpu.MemorySpace.SMEM),
            pl.BlockSpec(memory_space=pltpu.MemorySpace.SMEM),
        ],
        out_specs=pl.BlockSpec(memory_space=pltpu.MemorySpace.VMEM),
        cost_estimate=pl.CostEstimate(
            flops=16, transcendentals=2, bytes_accessed=12
        ),
    )(m, b)


def tight_sigmoid_ref(m, b, *, eps=EPS, delta=DELTA, gamma=GAMMA):
    """Pure-JAX reference matching the PyTorch forward exactly."""
    def u(a):
        return (1.0 + gamma * delta) * jax.nn.sigmoid(m * a + b)
    return jnp.sum(jnp.square(delta - u(-eps)) + jnp.square(1.0 + delta - u(0.0)))


if __name__ == "__main__":
    # Parameters exactly as in __init__: nn.Parameter(torch.zeros(1)).
    m_init = jnp.zeros((1,), dtype=jnp.float32)
    b_init = jnp.zeros((1,), dtype=jnp.float32)

    obj_zero = tight_sigmoid_forward(m_init, b_init)
    jax.block_until_ready(obj_zero)
    ref_zero = tight_sigmoid_ref(m_init, b_init)
    assert jnp.allclose(obj_zero[0, 0], ref_zero, atol=1e-6), (obj_zero, ref_zero)

    # Also exercise the kernel with deterministic non-trivial parameter values.
    key = jax.random.PRNGKey(0)
    km, kb = jax.random.split(key)
    m_rand = jax.random.normal(km, (1,), dtype=jnp.float32)
    b_rand = jax.random.normal(kb, (1,), dtype=jnp.float32)

    obj_rand = tight_sigmoid_forward(m_rand, b_rand)
    jax.block_until_ready(obj_rand)
    ref_rand = tight_sigmoid_ref(m_rand, b_rand)
    assert jnp.allclose(obj_rand[0, 0], ref_rand, atol=1e-6), (obj_rand, ref_rand)

    print("KERNEL_OK")
</pallas_src>

<mosaic_0001>
module attributes {stable_mosaic.version = 11 : i64} {
  func.func @_tight_sigmoid_kernel(%arg0: memref<1xf32, #tpu.memory_space<smem>>, %arg1: memref<1xf32, #tpu.memory_space<smem>>, %arg2: memref<1x1xf32, #tpu.memory_space<vmem>>) attributes {dimension_semantics = [], scalar_prefetch = 0 : i64, scratch_operands = 0 : i64, tpu.core_type = #tpu.core_type<tc>} {
    %c0 = arith.constant 0 : index
    %0 = memref.load %arg0[%c0] : memref<1xf32, #tpu.memory_space<smem>>
    %1 = vector.broadcast %0 : f32 to vector<1x1xf32>
    %c0_0 = arith.constant 0 : index
    %2 = memref.load %arg1[%c0_0] : memref<1xf32, #tpu.memory_space<smem>>
    %3 = vector.broadcast %2 : f32 to vector<1x1xf32>
    %cst = arith.constant 7.500000e-01 : f32
    %4 = vector.broadcast %cst : f32 to vector<1x1xf32>
    %5 = arith.mulf %1, %4 : vector<1x1xf32>
    %6 = arith.subf %3, %5 : vector<1x1xf32>
    %7 = arith.negf %6 : vector<1x1xf32>
    %8 = math.exp %7 : vector<1x1xf32>
    %cst_1 = arith.constant 1.000000e+00 : f32
    %9 = vector.broadcast %cst_1 : f32 to vector<1x1xf32>
    %10 = arith.addf %9, %8 : vector<1x1xf32>
    %11 = arith.divf %9, %10 : vector<1x1xf32>
    %cst_2 = arith.constant 1.245000e+00 : f32
    %12 = vector.broadcast %cst_2 : f32 to vector<1x1xf32>
    %13 = arith.mulf %12, %11 : vector<1x1xf32>
    %14 = arith.negf %3 : vector<1x1xf32>
    %15 = math.exp %14 : vector<1x1xf32>
    %cst_3 = arith.constant 1.000000e+00 : f32
    %16 = vector.broadcast %cst_3 : f32 to vector<1x1xf32>
    %17 = arith.addf %16, %15 : vector<1x1xf32>
    %18 = arith.divf %16, %17 : vector<1x1xf32>
    %cst_4 = arith.constant 1.245000e+00 : f32
    %19 = vector.broadcast %cst_4 : f32 to vector<1x1xf32>
    %20 = arith.mulf %19, %18 : vector<1x1xf32>
    %cst_5 = arith.constant 3.500000e-02 : f32
    %21 = vector.broadcast %cst_5 : f32 to vector<1x1xf32>
    %22 = arith.subf %21, %13 : vector<1x1xf32>
    %23 = arith.mulf %22, %22 : vector<1x1xf32>
    %cst_6 = arith.constant 1.035000e+00 : f32
    %24 = vector.broadcast %cst_6 : f32 to vector<1x1xf32>
    %25 = arith.subf %24, %20 : vector<1x1xf32>
    %26 = arith.mulf %25, %25 : vector<1x1xf32>
    %27 = arith.addf %23, %26 : vector<1x1xf32>
    %c0_7 = arith.constant 0 : index
    %c0_8 = arith.constant 0 : index
    %28 = vector.load %arg2[%c0_7, %c0_8] : memref<1x1xf32, #tpu.memory_space<vmem>>, vector<1x1xf32>
    tpu.vector_store %arg2[%c0_7, %c0_8], %27 {strides = array<i32>} : memref<1x1xf32, #tpu.memory_space<vmem>>, vector<1x1xf32>,
    return
  }
}

</mosaic_0001>

<llo_original>
// kernel: tpu_custom_call.1
$region0: #{tpu_custom_call.1}
  #allocation0 [shape = 'u32[]', space=smem, size = 0x4, offset = 0x4, fixed_abs, tag = 'smem constant byte address 0x4 - core index']
  #allocation1 [shape = 'u32[144,128]{1,0:T(1,128)}', space=vmem, size = 0x12000, scoped, tag = 'internal scratch']
  #allocation2 [shape = 'f32[1]{0:T(128)S(6)}', space=smem, size = 0x200, scoped, tag = 'scoped memory for tpu_custom_call.1']
  #allocation3 [shape = 'f32[1]{0:T(128)S(6)}', space=smem, size = 0x200, scoped, tag = 'scoped memory for tpu_custom_call.1']
  %s0 = inlined_call_operand.<no memory space> [shape: f32[1], index: 0, kind: input, shape index: {}]
  %s1 = inlined_call_operand.<no memory space> [shape: f32[1], index: 1, kind: input, shape index: {}]
  %s2 = inlined_call_operand.hbm [shape: f32[1,1], index: 2, kind: output, shape index: {}]
  %s3 = sld [smem:[#allocation0]]
  $region18: #{tpu_custom_call.1} parent=0
    _
  %s5 = ssub.s32 1, %s3
  %s6 = scalar_select 0, %s5, %s3
  %7 = sst [smem:[#allocation2]] %s0
  %8 = sst [smem:[#allocation3]] %s1
  $region1: #{tpu_custom_call.1} parent=0
    #allocation4 [shape = 'u8[512]{0}', space=vmem, size = 0x400, scoped, tag = 'output window, operand 0, single buffered']
    #allocation5 [shape = 's32[1]{0}', space=sflag, size = 0x4, scoped, tag = 'scoped memory for tpu_custom_call.1']
    %9 = vsyncpa [#allocation5], 0
    // Predicated region
    $region2: #{tpu_custom_call.1} parent=1 // pred_check
      _
    $region3: #{tpu_custom_call.1} parent=1 // pred_check_branch
      %11 = sbr.rel (0) target = $region5
    $region4: #{tpu_custom_call.1} parent=1 // pred_region
      _
    $region5: #{tpu_custom_call.1} parent=1 // pred_fallthru
      _
    // Predicated region
    $region6: #{tpu_custom_call.1} parent=1 // pred_check
      _
    $region7: #{tpu_custom_call.1} parent=1 // pred_check_branch
      %13 = sbr.rel (0) target = $region9
    $region8: #{tpu_custom_call.1} parent=1 // pred_region
      _
    $region9: #{tpu_custom_call.1} parent=1 // pred_fallthru
      _
    %s14 = sld [smem:[#allocation2]]
    %v15 = vstv %s14
    %s16 = sld [smem:[#allocation3]]
    %v17 = vstv %s16
    %v18 = vmul.f32 %v15, 0.75
    %v19 = vsub.f32 %v17, %v18
    %v20 = vxor.u32 %v19, 2147483648
    %v21 = vmul.f32 %v20, 1.442695
    %v22 = vpow.pop %v21
    %v23 = vadd.f32 %v22, 1.0
    %v24 = vrcp.pop %v23
    %v25 = vmul.f32 1.0, %v24
    %v26 = vmul.f32 %v25, 1.245
    %v27 = vxor.u32 %v17, 2147483648
    %v28 = vmul.f32 %v27, 1.442695
    %v29 = vpow.pop %v28
    %v30 = vadd.f32 %v29, 1.0
    %v31 = vrcp.pop %v30
    %v32 = vmul.f32 1.0, %v31
    %v33 = vmul.f32 %v32, 1.245
    %v34 = vsub.f32 0.035, %v26
    %v35 = vmul.f32 %v34, %v34
    %v36 = vsub.f32 1.035, %v33
    %v37 = vmul.f32 %v36, %v36
    %v38 = vadd.f32 %v35, %v37
    %vm39 = vcmask 0
    %40 = vst.msk [vmem:[#allocation4] sm:$0x1] %vm39, %v38
    // Predicated region
    $region10: #{tpu_custom_call.1} parent=1 // pred_check
      _
    $region11: #{tpu_custom_call.1} parent=1 // pred_check_branch
      %42 = sbr.rel (0) target = $region13
    $region12: #{tpu_custom_call.1} parent=1 // pred_region
      %s44 = ssub.s32 16, 16
      %45 = vsyncadd [#allocation5], %s44
      %s47 = sshll.u32 [#allocation4], 4
      %s48 = int_to_ptr.vmem [resolvable:$true] %s47
      %50 = dma.vmem_to_hbm [thread:$0]  %s48, 16, %s2, [#allocation5]
    $region13: #{tpu_custom_call.1} parent=1 // pred_fallthru
      _
    // Predicated region
    $region14: #{tpu_custom_call.1} parent=1 // pred_check
      _
    $region15: #{tpu_custom_call.1} parent=1 // pred_check_branch
      %52 = sbr.rel (0) target = $region17
    $region16: #{tpu_custom_call.1} parent=1 // pred_region
      %53 = dma.done [#allocation5], 16
    $region17: #{tpu_custom_call.1} parent=1 // pred_fallthru
      _
    %54 = vsyncpa [#allocation5], 1

</llo_original>
